<compile_context>
chip_gen: v5e
topology: v5e:2x2
jax: 0.10.0
libtpu: 0.0.40
codegen_flags: <defaults>
</compile_context>

<pallas_src>
import jax
import jax.numpy as jnp
from jax.experimental import pallas as pl
from jax.experimental.pallas import tpu as pltpu


def _round_up(n, m):
    return ((n + m - 1) // m) * m


# ---------------------------------------------------------------------------
# Kernels
# ---------------------------------------------------------------------------
def _logreg_kernel(x_ref, w_ref, b_ref, o_ref):
    # x_ref: (TB, F)  w_ref: (F, C)  b_ref: (1, C)  o_ref: (TB, C)
    acc = jnp.dot(x_ref[...], w_ref[...], preferred_element_type=jnp.float32)
    o_ref[...] = (acc + b_ref[...].astype(jnp.float32)).astype(o_ref.dtype)


def _logreg_ktiled_kernel(x_ref, w_ref, b_ref, o_ref, acc_ref):
    # x_ref: (TB, TK)  w_ref: (TK, C)  b_ref: (1, C)  o_ref/acc_ref: (TB, C)
    k = pl.program_id(1)

    @pl.when(k == 0)
    def _():
        acc_ref[...] = jnp.zeros_like(acc_ref)

    acc_ref[...] += jnp.dot(x_ref[...], w_ref[...],
                            preferred_element_type=jnp.float32)

    @pl.when(k == pl.num_programs(1) - 1)
    def _():
        o_ref[...] = (acc_ref[...] + b_ref[...].astype(jnp.float32)
                      ).astype(o_ref.dtype)


# ---------------------------------------------------------------------------
# Wrapper
# ---------------------------------------------------------------------------
def logistic_regression_forward(x, weights, bias):
    """x: (B, ...) flattened per-sample to (B, F); weights: (F, C); bias: (C,).
    Returns (B, C) in x.dtype (matches the PyTorch module's forward)."""
    B = x.shape[0]
    x2d = x.reshape(B, -1)            # keep caller's dtype: no extra HBM pass
    F, C = weights.shape
    assert x2d.shape[1] == F, "flattened feature dim must match weights"

    # bf16 activations drive the MXU at full rate -> match W. f16 is not a
    # native MXU dtype on v5e/v6e/v7x, so leave W in f32 in that case.
    if x2d.dtype == jnp.bfloat16:
        weights = weights.astype(jnp.bfloat16)
    bias2d = bias.reshape(1, C).astype(jnp.float32)

    x_b = jnp.dtype(x2d.dtype).itemsize
    w_b = jnp.dtype(weights.dtype).itemsize
    o_b = x_b

    # --- per-generation VMEM budget (v7x worst case 64 MiB as fallback) ------
    try:
        vmem_phys = int(pltpu.get_tpu_info().vmem_capacity_bytes)
    except Exception:
        vmem_phys = 64 * 1024 * 1024
    vmem_limit = min(int(0.85 * vmem_phys), 100 * 1024 * 1024)
    budget = vmem_limit - 8 * 1024 * 1024     # headroom for Mosaic internals

    # VMEM footprints use lane/sublane-padded physical tile sizes, but the HBM
    # arrays themselves stay un-padded (no wrapper pad / slice passes).
    F_l = _round_up(F, 128)
    C_l = _round_up(C, 128)
    w_foot = _round_up(F, 8) * C_l * w_b      # resident, single-buffered W
    b_foot = 8 * C_l * 4
    per_row = 2 * (F_l * x_b + C_l * o_b)     # double-buffered x / out rows

    out_shape = jax.ShapeDtypeStruct((B, C), x2d.dtype)

    def _params(sem):
        return pltpu.CompilerParams(dimension_semantics=sem,
                                    vmem_limit_bytes=vmem_limit)

    def _pick_tb(avail_bytes, row_bytes):
        tb = max(8, min(4096, avail_bytes // max(row_bytes, 1)))
        tb = (tb // 8) * 8
        # Keep >= 2 grid steps whenever B allows it so the "parallel" batch
        # axis actually feeds both TensorCores on v7x.
        tb = min(tb, max(8, _round_up(pl.cdiv(B, 2), 8)))
        return max(8, tb)

    # ---- simple path: W/bias fully resident, batch-tiled x -------------------
    if w_foot + b_foot + 8 * per_row <= budget:
        tb = _pick_tb(budget - w_foot - b_foot, per_row)
        grid = (pl.cdiv(B, tb),)

        def _call(single_buffer_consts):
            if single_buffer_consts:
                w_spec = pl.BlockSpec((F, C), lambda i: (0, 0),
                                      pipeline_mode=pl.Buffered(buffer_count=1))
                b_spec = pl.BlockSpec((1, C), lambda i: (0, 0),
                                      pipeline_mode=pl.Buffered(buffer_count=1))
            else:
                w_spec = pl.BlockSpec((F, C), lambda i: (0, 0))
                b_spec = pl.BlockSpec((1, C), lambda i: (0, 0))
            return pl.pallas_call(
                _logreg_kernel,
                out_shape=out_shape,
                grid=grid,
                in_specs=[
                    pl.BlockSpec((tb, F), lambda i: (i, 0)),  # batch-tiled x
                    w_spec,                                    # resident W
                    b_spec,                                    # resident bias
                ],
                out_specs=pl.BlockSpec((tb, C), lambda i: (i, 0)),
                compiler_params=_params(("parallel",)),
            )(x2d, weights, bias2d)

        try:
            return _call(True)
        except Exception:
            # Graceful fallback if single-buffered pipeline_mode is unsupported.
            return _call(False)

    # ---- fallback: W too large to keep resident -> tile the K (feature) axis -
    # TODO(synk): also tile C with an extra output axis when C alone is too
    # wide for VMEM.
    tk = min(_round_up(F, 128), 1024)
    Fp = _round_up(F, tk)
    xp = x2d if Fp == F else jnp.pad(x2d, ((0, 0), (0, Fp - F)))
    wp = weights if Fp == F else jnp.pad(weights, ((0, Fp - F), (0, 0)))

    fixed = 2 * tk * C_l * w_b + b_foot                   # double-buffered W k-tile
    row = 2 * tk * x_b + 2 * C_l * o_b + C_l * 4          # x/out (dbl-buf) + f32 acc
    tb = _pick_tb(max(budget - fixed, 8 * row), row)
    grid = (pl.cdiv(B, tb), Fp // tk)

    return pl.pallas_call(
        _logreg_ktiled_kernel,
        out_shape=out_shape,
        grid=grid,
        in_specs=[
            pl.BlockSpec((tb, tk), lambda i, k: (i, k)),
            pl.BlockSpec((tk, C), lambda i, k: (k, 0)),
            pl.BlockSpec((1, C), lambda i, k: (0, 0)),
        ],
        out_specs=pl.BlockSpec((tb, C), lambda i, k: (i, 0)),
        scratch_shapes=[pltpu.VMEM((tb, C), jnp.float32)],
        compiler_params=_params(("parallel", "arbitrary")),
    )(xp, wp, bias2d)


if __name__ == "__main__":
    # Module config: num_features, num_classes (small, kernel-friendly sizes).
    num_features = 32
    num_classes = 16
    batch = 8

    key = jax.random.PRNGKey(0)
    k_x, k_w, k_b = jax.random.split(key, 3)

    # Deterministic "Lecun-style" init as in __init__: normal(0, 1/num_classes).
    std = 1.0 / num_classes
    weights = std * jax.random.normal(k_w, (num_features, num_classes),
                                      dtype=jnp.float32)
    bias = std * jax.random.normal(k_b, (num_classes,), dtype=jnp.float32)

    # Input: (batch, num_features) float32.
    x = jax.random.normal(k_x, (batch, num_features), dtype=jnp.float32)

    out = logistic_regression_forward(x, weights, bias)
    out = jax.block_until_ready(out)

    # Reference check in plain JAX (matches the PyTorch per-row loop).
    ref = x.reshape(batch, -1) @ weights + bias
    assert out.shape == (batch, num_classes)
    assert out.dtype == x.dtype
    assert jnp.allclose(out, ref, atol=1e-5, rtol=1e-5)

    print("KERNEL_OK")
</pallas_src>

<mosaic_0001>
module attributes {stable_mosaic.version = 11 : i64} {
  func.func @_logreg_kernel(%arg0: i32, %arg1: memref<8x32xf32, #tpu.memory_space<vmem>>, %arg2: memref<32x16xf32, #tpu.memory_space<vmem>>, %arg3: memref<1x16xf32, #tpu.memory_space<vmem>>, %arg4: memref<8x16xf32, #tpu.memory_space<vmem>>) attributes {dimension_semantics = [#tpu.dimension_semantics<parallel>], iteration_bounds = array<i64: 1>, scalar_prefetch = 0 : i64, scratch_operands = 0 : i64, tpu.core_type = #tpu.core_type<tc>, window_params = [{transform_indices = @transform_0, window_bounds = array<i64: 8, 32>}, {pipeline_mode = #tpu.pipeline_mode<synchronous>, transform_indices = @transform_1, window_bounds = array<i64: 32, 16>}, {pipeline_mode = #tpu.pipeline_mode<synchronous>, transform_indices = @transform_2, window_bounds = array<i64: 1, 16>}, {transform_indices = @transform_3, window_bounds = array<i64: 8, 16>}]} {
    %c0 = arith.constant 0 : index
    %c0_0 = arith.constant 0 : index
    %0 = vector.load %arg1[%c0, %c0_0] : memref<8x32xf32, #tpu.memory_space<vmem>>, vector<8x32xf32>
    %c0_1 = arith.constant 0 : index
    %c0_2 = arith.constant 0 : index
    %1 = vector.load %arg2[%c0_1, %c0_2] : memref<32x16xf32, #tpu.memory_space<vmem>>, vector<32x16xf32>
    %cst = arith.constant dense<0.000000e+00> : vector<8x16xf32>
    %2 = tpu.matmul %0, %1, %cst {dimension_numbers = #tpu.dot_dimension_numbers<[1], [0], [0], [1], [0, 0, 1, 1], [], []>} : vector<8x32xf32>, vector<32x16xf32>, vector<8x16xf32> -> vector<8x16xf32>
    %c0_3 = arith.constant 0 : index
    %c0_4 = arith.constant 0 : index
    %3 = vector.load %arg3[%c0_3, %c0_4] : memref<1x16xf32, #tpu.memory_space<vmem>>, vector<1x16xf32>
    %4 = vector.broadcast %3 : vector<1x16xf32> to vector<8x16xf32>
    %5 = arith.addf %2, %4 : vector<8x16xf32>
    %c0_5 = arith.constant 0 : index
    %c0_6 = arith.constant 0 : index
    %6 = vector.load %arg4[%c0_5, %c0_6] : memref<8x16xf32, #tpu.memory_space<vmem>>, vector<8x16xf32>
    tpu.vector_store %arg4[%c0_5, %c0_6], %5 {strides = array<i32>} : memref<8x16xf32, #tpu.memory_space<vmem>>, vector<8x16xf32>,
    return
  }
  func.func @transform_0(%arg0: i32) -> (i32, i32) {
    %c0_i32 = arith.constant 0 : i32
    %c0_i32_0 = arith.constant 0 : i32
    return %arg0, %c0_i32 : i32, i32
  }
  func.func @transform_1(%arg0: i32) -> (i32, i32) {
    %c0_i32 = arith.constant 0 : i32
    %c0_i32_0 = arith.constant 0 : i32
    %c0_i32_1 = arith.constant 0 : i32
    return %c0_i32, %c0_i32_0 : i32, i32
  }
  func.func @transform_2(%arg0: i32) -> (i32, i32) {
    %c0_i32 = arith.constant 0 : i32
    %c0_i32_0 = arith.constant 0 : i32
    %c0_i32_1 = arith.constant 0 : i32
    return %c0_i32, %c0_i32_0 : i32, i32
  }
  func.func @transform_3(%arg0: i32) -> (i32, i32) {
    %c0_i32 = arith.constant 0 : i32
    %c0_i32_0 = arith.constant 0 : i32
    return %arg0, %c0_i32 : i32, i32
  }
}

module attributes {stable_mosaic.version = 11 : i64} {
  func.func @_logreg_kernel(%arg0: i32, %arg1: memref<8x32xf32, #tpu.memory_space<vmem>>, %arg2: memref<32x16xf32, #tpu.memory_space<vmem>>, %arg3: memref<1x16xf32, #tpu.memory_space<vmem>>, %arg4: memref<8x16xf32, #tpu.memory_space<vmem>>) attributes {dimension_semantics = [#tpu.dimension_semantics<parallel>], iteration_bounds = array<i64: 1>, scalar_prefetch = 0 : i64, scratch_operands = 0 : i64, tpu.core_type = #tpu.core_type<tc>, window_params = [{transform_indices = @transform_0, window_bounds = array<i64: 8, 32>}, {pipeline_mode = #tpu.pipeline_mode<synchronous>, transform_indices = @transform_1, window_bounds = array<i64: 32, 16>}, {pipeline_mode = #tpu.pipeline_mode<synchronous>, transform_indices = @transform_2, window_bounds = array<i64: 1, 16>}, {transform_indices = @transform_3, window_bounds = array<i64: 8, 16>}]} {
    %c0 = arith.constant 0 : index
    %c0_0 = arith.constant 0 : index
    %0 = vector.load %arg1[%c0, %c0_0] : memref<8x32xf32, #tpu.memory_space<vmem>>, vector<8x32xf32>
    %c0_1 = arith.constant 0 : index
    %c0_2 = arith.constant 0 : index
    %1 = vector.load %arg2[%c0_1, %c0_2] : memref<32x16xf32, #tpu.memory_space<vmem>>, vector<32x16xf32>
    %cst = arith.constant dense<0.000000e+00> : vector<8x16xf32>
    %2 = tpu.matmul %0, %1, %cst {dimension_numbers = #tpu.dot_dimension_numbers<[1], [0], [0], [1], [0, 0, 1, 1], [], []>} : vector<8x32xf32>, vector<32x16xf32>, vector<8x16xf32> -> vector<8x16xf32>
    %c0_3 = arith.constant 0 : index
    %c0_4 = arith.constant 0 : index
    %3 = vector.load %arg3[%c0_3, %c0_4] : memref<1x16xf32, #tpu.memory_space<vmem>>, vector<1x16xf32>
    %4 = vector.broadcast %3 : vector<1x16xf32> to vector<8x16xf32>
    %5 = arith.addf %2, %4 : vector<8x16xf32>
    %c0_5 = arith.constant 0 : index
    %c0_6 = arith.constant 0 : index
    %6 = vector.load %arg4[%c0_5, %c0_6] : memref<8x16xf32, #tpu.memory_space<vmem>>, vector<8x16xf32>
    tpu.vector_store %arg4[%c0_5, %c0_6], %5 {strides = array<i32>} : memref<8x16xf32, #tpu.memory_space<vmem>>, vector<8x16xf32>,
    return
  }
  func.func @transform_0(%arg0: i32) -> (i32, i32) {
    %c0_i32 = arith.constant 0 : i32
    %c0_i32_0 = arith.constant 0 : i32
    return %arg0, %c0_i32 : i32, i32
  }
  func.func @transform_1(%arg0: i32) -> (i32, i32) {
    %c0_i32 = arith.constant 0 : i32
    %c0_i32_0 = arith.constant 0 : i32
    %c0_i32_1 = arith.constant 0 : i32
    return %c0_i32, %c0_i32_0 : i32, i32
  }
  func.func @transform_2(%arg0: i32) -> (i32, i32) {
    %c0_i32 = arith.constant 0 : i32
    %c0_i32_0 = arith.constant 0 : i32
    %c0_i32_1 = arith.constant 0 : i32
    return %c0_i32, %c0_i32_0 : i32, i32
  }
  func.func @transform_3(%arg0: i32) -> (i32, i32) {
    %c0_i32 = arith.constant 0 : i32
    %c0_i32_0 = arith.constant 0 : i32
    return %arg0, %c0_i32 : i32, i32
  }
}

</mosaic_0001>

<llo_original>
// kernel: tpu_custom_call.1
$region0: #{tpu_custom_call.1}
  #allocation0 [shape = 'u32[]', space=smem, size = 0x4, offset = 0x4, fixed_abs, tag = 'smem constant byte address 0x4 - core index']
  #allocation1 [shape = 'u32[72,128]{1,0:T(1,128)}', space=vmem, size = 0x9000, scoped, tag = 'internal scratch']
  %s0 = inlined_call_operand.vmem [shape: f32[8,32], index: 0, kind: input, shape index: {}]
  %s1 = inlined_call_operand.vmem [shape: f32[32,16], index: 1, kind: input, shape index: {}]
  %s2 = inlined_call_operand.vmem [shape: f32[1,16], index: 2, kind: input, shape index: {}]
  %s3 = inlined_call_operand.hbm [shape: f32[8,16], index: 3, kind: output, shape index: {}]
  %s4 = sld [smem:[#allocation0]]
  $region22: #{tpu_custom_call.1} parent=0
    _
  %s6 = ssub.s32 1, %s4
  %s7 = scalar_select 0, %s6, %s4
  $region1: #{tpu_custom_call.1} parent=0
    #allocation2 [shape = 'u8[4096]{0}', space=vmem, size = 0x1000, scoped, tag = 'output window, operand 0, single buffered']
    #allocation3 [shape = 's32[1]{0}', space=sflag, size = 0x4, scoped, tag = 'scoped memory for tpu_custom_call.1']
    %8 = vsyncpa [#allocation3], 0
    // Predicated region
    $region2: #{tpu_custom_call.1} parent=1 // pred_check
      _
    $region3: #{tpu_custom_call.1} parent=1 // pred_check_branch
      %10 = sbr.rel (0) target = $region5
    $region4: #{tpu_custom_call.1} parent=1 // pred_region
      _
    $region5: #{tpu_custom_call.1} parent=1 // pred_fallthru
      _
    // Predicated region
    $region6: #{tpu_custom_call.1} parent=1 // pred_check
      _
    $region7: #{tpu_custom_call.1} parent=1 // pred_check_branch
      %12 = sbr.rel (0) target = $region9
    $region8: #{tpu_custom_call.1} parent=1 // pred_region
      _
    $region9: #{tpu_custom_call.1} parent=1 // pred_fallthru
      _
    // Predicated region
    $region10: #{tpu_custom_call.1} parent=1 // pred_check
      _
    $region11: #{tpu_custom_call.1} parent=1 // pred_check_branch
      %14 = sbr.rel (0) target = $region13
    $region12: #{tpu_custom_call.1} parent=1 // pred_region
      _
    $region13: #{tpu_custom_call.1} parent=1 // pred_fallthru
      _
    %v15 = vld [vmem:[%s0] sm:$0xff]
    %v16 = vld [vmem:[%s1] sm:$0xff]
    %v17 = vld [vmem:[%s1 + $0x8] sm:$0xff]
    %v18 = vld [vmem:[%s1 + $0x10] sm:$0xff]
    %v19 = vld [vmem:[%s1 + $0x18] sm:$0xff]
    %v20 = vld [vmem:[%s2] sm:$0x1]
    %v22 = vperm.slane %v20, 0
    %vm24 = vcmask 261120
    %v26 = vsel %vm24, %v15, 0
    %28 = vmatpush.msra.mxu0 0.0
    %29 = vmatpush.msra.mxu0 0.0
    %30 = vmatpush.msra.mxu0 0.0
    %31 = vmatpush.msra.mxu0 0.0
    %32 = vmatpush.msra.mxu0 0.0
    %33 = vmatpush.msra.mxu0 0.0
    %34 = vmatpush.msra.mxu0 0.0
    %35 = vmatpush.msra.mxu0 0.0
    %36 = vmatpush.msra.mxu0 0.0
    %37 = vmatpush.msra.mxu0 0.0
    %38 = vmatpush.msra.mxu0 0.0
    %39 = vmatpush.msra.mxu0 0.0
    %40 = vmatpush.msra.mxu0 %v19
    %41 = vmatpush.msra.mxu0 %v18
    %42 = vmatpush.msra.mxu0 %v17
    %43 = vmatpush.msra.mxu0 %v16
    %44 = vmatmul.f32.gmra.mxu0 %v26
    %v45 = vpop.f32.mrf.mxu0
    %v46 = vadd.f32 %v22, %v45
    %47 = vdwg.mxu0
    %vm48 = vcmask 130048
    %49 = vst.msk [vmem:[#allocation2] sm:$0xff] %vm48, %v46
    // Predicated region
    $region14: #{tpu_custom_call.1} parent=1 // pred_check
      _
    $region15: #{tpu_custom_call.1} parent=1 // pred_check_branch
      %51 = sbr.rel (0) target = $region17
    $region16: #{tpu_custom_call.1} parent=1 // pred_region
      %53 = vsyncadd [#allocation3], 0
      %s55 = sshll.u32 [#allocation2], 4
      %s56 = int_to_ptr.vmem [resolvable:$true] %s55
      %s57 = sshll.u32 %s3, 4
      %s58 = int_to_ptr.hbm [resolvable:$true] %s57
      %60 = dma.vmem_to_hbm [thread:$0]  %s56, 128, %s58, [#allocation3]
    $region17: #{tpu_custom_call.1} parent=1 // pred_fallthru
      _
    // Predicated region
    $region18: #{tpu_custom_call.1} parent=1 // pred_check
      _
    $region19: #{tpu_custom_call.1} parent=1 // pred_check_branch
      %62 = sbr.rel (0) target = $region21
    $region20: #{tpu_custom_call.1} parent=1 // pred_region
      %64 = dma.done [#allocation3], 128
    $region21: #{tpu_custom_call.1} parent=1 // pred_fallthru
      _
    %65 = vsyncpa [#allocation3], 1

// kernel: tpu_custom_call.1
$region0: #{tpu_custom_call.1}
  #allocation0 [shape = 'u32[]', space=smem, size = 0x4, offset = 0x4, fixed_abs, tag = 'smem constant byte address 0x4 - core index']
  #allocation1 [shape = 'u32[72,128]{1,0:T(1,128)}', space=vmem, size = 0x9000, scoped, tag = 'internal scratch']
  %s0 = inlined_call_operand.vmem [shape: f32[8,32], index: 0, kind: input, shape index: {}]
  %s1 = inlined_call_operand.vmem [shape: f32[32,16], index: 1, kind: input, shape index: {}]
  %s2 = inlined_call_operand.vmem [shape: f32[1,16], index: 2, kind: input, shape index: {}]
  %s3 = inlined_call_operand.hbm [shape: f32[8,16], index: 3, kind: output, shape index: {}]
  %s4 = sld [smem:[#allocation0]]
  $region22: #{tpu_custom_call.1} parent=0
    _
  %s6 = ssub.s32 1, %s4
  %s7 = scalar_select 0, %s6, %s4
  $region1: #{tpu_custom_call.1} parent=0
    #allocation2 [shape = 'u8[4096]{0}', space=vmem, size = 0x1000, scoped, tag = 'output window, operand 0, single buffered']
    #allocation3 [shape = 's32[1]{0}', space=sflag, size = 0x4, scoped, tag = 'scoped memory for tpu_custom_call.1']
    %8 = vsyncpa [#allocation3], 0
    // Predicated region
    $region2: #{tpu_custom_call.1} parent=1 // pred_check
      _
    $region3: #{tpu_custom_call.1} parent=1 // pred_check_branch
      %10 = sbr.rel (0) target = $region5
    $region4: #{tpu_custom_call.1} parent=1 // pred_region
      _
    $region5: #{tpu_custom_call.1} parent=1 // pred_fallthru
      _
    // Predicated region
    $region6: #{tpu_custom_call.1} parent=1 // pred_check
      _
    $region7: #{tpu_custom_call.1} parent=1 // pred_check_branch
      %12 = sbr.rel (0) target = $region9
    $region8: #{tpu_custom_call.1} parent=1 // pred_region
      _
    $region9: #{tpu_custom_call.1} parent=1 // pred_fallthru
      _
    // Predicated region
    $region10: #{tpu_custom_call.1} parent=1 // pred_check
      _
    $region11: #{tpu_custom_call.1} parent=1 // pred_check_branch
      %14 = sbr.rel (0) target = $region13
    $region12: #{tpu_custom_call.1} parent=1 // pred_region
      _
    $region13: #{tpu_custom_call.1} parent=1 // pred_fallthru
      _
    %v15 = vld [vmem:[%s0] sm:$0xff]
    %v16 = vld [vmem:[%s1] sm:$0xff]
    %v17 = vld [vmem:[%s1 + $0x8] sm:$0xff]
    %v18 = vld [vmem:[%s1 + $0x10] sm:$0xff]
    %v19 = vld [vmem:[%s1 + $0x18] sm:$0xff]
    %v20 = vld [vmem:[%s2] sm:$0x1]
    %v22 = vperm.slane %v20, 0
    %vm24 = vcmask 261120
    %v26 = vsel %vm24, %v15, 0
    %28 = vmatpush.msra.mxu0 0.0
    %29 = vmatpush.msra.mxu0 0.0
    %30 = vmatpush.msra.mxu0 0.0
    %31 = vmatpush.msra.mxu0 0.0
    %32 = vmatpush.msra.mxu0 0.0
    %33 = vmatpush.msra.mxu0 0.0
    %34 = vmatpush.msra.mxu0 0.0
    %35 = vmatpush.msra.mxu0 0.0
    %36 = vmatpush.msra.mxu0 0.0
    %37 = vmatpush.msra.mxu0 0.0
    %38 = vmatpush.msra.mxu0 0.0
    %39 = vmatpush.msra.mxu0 0.0
    %40 = vmatpush.msra.mxu0 %v19
    %41 = vmatpush.msra.mxu0 %v18
    %42 = vmatpush.msra.mxu0 %v17
    %43 = vmatpush.msra.mxu0 %v16
    %44 = vmatmul.f32.gmra.mxu0 %v26
    %v45 = vpop.f32.mrf.mxu0
    %v46 = vadd.f32 %v22, %v45
    %47 = vdwg.mxu0
    %vm48 = vcmask 130048
    %49 = vst.msk [vmem:[#allocation2] sm:$0xff] %vm48, %v46
    // Predicated region
    $region14: #{tpu_custom_call.1} parent=1 // pred_check
      _
    $region15: #{tpu_custom_call.1} parent=1 // pred_check_branch
      %51 = sbr.rel (0) target = $region17
    $region16: #{tpu_custom_call.1} parent=1 // pred_region
      %53 = vsyncadd [#allocation3], 0
      %s55 = sshll.u32 [#allocation2], 4
      %s56 = int_to_ptr.vmem [resolvable:$true] %s55
      %s57 = sshll.u32 %s3, 4
      %s58 = int_to_ptr.hbm [resolvable:$true] %s57
      %60 = dma.vmem_to_hbm [thread:$0]  %s56, 128, %s58, [#allocation3]
    $region17: #{tpu_custom_call.1} parent=1 // pred_fallthru
      _
    // Predicated region
    $region18: #{tpu_custom_call.1} parent=1 // pred_check
      _
    $region19: #{tpu_custom_call.1} parent=1 // pred_check_branch
      %62 = sbr.rel (0) target = $region21
    $region20: #{tpu_custom_call.1} parent=1 // pred_region
      %64 = dma.done [#allocation3], 128
    $region21: #{tpu_custom_call.1} parent=1 // pred_fallthru
      _
    %65 = vsyncpa [#allocation3], 1

</llo_original>
